<compile_context>
chip_gen: v5e
topology: v5e:2x2
jax: 0.10.0
libtpu: 0.0.40
codegen_flags: <defaults>
</compile_context>

<pallas_src>
import functools

import jax
import jax.numpy as jnp
from jax.experimental import pallas as pl
from jax.experimental.pallas import tpu as pltpu


def _svdd_kernel(radius_ref, feat_ref, center_ref, out_ref, acc_ref, *,
                 nu, reduction, batch, block_rows):
    # radius_ref : SMEM (1,)         float32
    # feat_ref   : VMEM (TB, D)      native dtype (tile i of features)
    # center_ref : VMEM (1, D)       native dtype
    # out_ref    : SMEM (1,)         float32 (scalar loss)
    # acc_ref    : SMEM (1,) scratch float32 (running batch reduction)
    i = pl.program_id(0)
    n = pl.num_programs(0)

    @pl.when(i == 0)
    def _():
        acc_ref[0] = jnp.float32(0.0)

    # Upcast in-kernel; the HBM stream stays in the native (possibly bf16) dtype.
    f = feat_ref[...].astype(jnp.float32)            # [TB, D]
    c = center_ref[...].astype(jnp.float32)          # [1, D] (lane-dim broadcast)
    diff = f - c
    # Per-row squared distance. XLU lane reduce; hidden behind the HBM stream.
    dist_sq = jnp.sum(diff * diff, axis=1, keepdims=True)   # [TB, 1]

    # Mask padded rows of the last (partial) tile: their block contents are
    # undefined and must not contribute to the loss.
    row = jax.lax.broadcasted_iota(jnp.int32, (block_rows, 1), 0) + i * block_rows
    valid = row < batch

    if reduction == "simple":
        contrib = jnp.where(valid, dist_sq, 0.0)
    else:
        r = radius_ref[0]
        r2 = r * r
        contrib = jnp.where(valid, jnp.maximum(dist_sq - r2, 0.0), 0.0)

    acc_ref[0] += jnp.sum(contrib)

    @pl.when(i == n - 1)
    def _():
        total = acc_ref[0]
        if reduction == "simple":
            out_ref[0] = total / jnp.float32(batch)
        else:
            r = radius_ref[0]
            r2 = r * r
            if reduction == "mean":
                out_ref[0] = r2 + jnp.float32(1.0 / (nu * batch)) * total
            else:  # "sum"
                out_ref[0] = r2 + jnp.float32(1.0 / nu) * total


def _choose_block_rows(batch, dim, itemsize, target_bytes=4 << 20, max_rows=4096):
    """Pick a batch-tile row count: ~4 MiB per buffer, multiple of 8, capped."""
    rows = target_bytes // max(1, dim * itemsize)
    rows = int(max(8, min(max_rows, rows)))
    rows = (rows // 8) * 8
    if batch <= rows:
        return int(batch)        # full array -> no (8,128) divisibility needed
    return rows


def deep_svdd_loss(features, center, radius, *, nu=0.1, reduction="mean",
                   block_rows=None):
    """Pallas implementation of DeepSVDDLoss.forward.

    features: [B, D] float (any float dtype; streamed natively)
    center:   [D]    float
    radius:   scalar float
    returns:  scalar float32
    """
    assert reduction in ("mean", "sum", "simple")
    B, D = features.shape
    center2 = center.reshape(1, D)                       # keep native dtype
    radius1 = jnp.asarray(radius).astype(jnp.float32).reshape(1)

    if block_rows is None:
        block_rows = _choose_block_rows(B, D, features.dtype.itemsize)
    block_rows = int(block_rows)
    num_tiles = pl.cdiv(B, block_rows)

    kernel = functools.partial(
        _svdd_kernel,
        nu=float(nu),
        reduction=reduction,
        batch=int(B),
        block_rows=block_rows,
    )

    grid_spec = pltpu.PrefetchScalarGridSpec(
        num_scalar_prefetch=0,
        grid=(num_tiles,),
        in_specs=[
            pl.BlockSpec(memory_space=pltpu.SMEM),            # radius scalar
            pl.BlockSpec((block_rows, D), lambda i: (i, 0)),  # features tile
            pl.BlockSpec((1, D), lambda i: (0, 0)),           # center (resident)
        ],
        out_specs=pl.BlockSpec(memory_space=pltpu.SMEM),      # scalar loss
        scratch_shapes=[pltpu.SMEM((1,), jnp.float32)],       # running sum
    )

    out = pl.pallas_call(
        kernel,
        out_shape=jax.ShapeDtypeStruct((1,), jnp.float32),
        grid_spec=grid_spec,
        compiler_params=pltpu.CompilerParams(
            dimension_semantics=("arbitrary",),   # batch axis is a reduction
        ),
    )(radius1, features, center2)
    return out[0]


def _reference(features, center, radius, nu=0.1, reduction="mean"):
    f = features.astype(jnp.float32)
    c = center.astype(jnp.float32)
    dist_sq = jnp.sum((f - c[None, :]) ** 2, axis=1)
    if reduction == "simple":
        return jnp.mean(dist_sq)
    r2 = jnp.float32(radius) ** 2
    loss_term = jnp.maximum(dist_sq - r2, 0.0)
    if reduction == "mean":
        return r2 + 1.0 / (nu * features.shape[0]) * jnp.sum(loss_term)
    return r2 + 1.0 / nu * jnp.sum(loss_term)


if __name__ == "__main__":
    key = jax.random.PRNGKey(0)
    k_feat, k_center, k_feat2 = jax.random.split(key, 3)

    ok = True

    # Case 1: small shape consistent with the module ([batch, latent_dim]).
    batch, latent_dim = 2, 32
    features = jax.random.normal(k_feat, (batch, latent_dim), dtype=jnp.float32)
    center = jax.random.normal(k_center, (latent_dim,), dtype=jnp.float32)
    radius = jnp.float32(0.5)

    for reduction in ("mean", "sum", "simple"):
        got = jax.block_until_ready(
            deep_svdd_loss(features, center, radius, nu=0.1, reduction=reduction))
        want = _reference(features, center, radius, nu=0.1, reduction=reduction)
        if not jnp.allclose(got, want, rtol=1e-5, atol=1e-5):
            ok = False
            print(f"MISMATCH [{reduction}]: got={got} want={want}")

    # Case 2: exercise the tiled + masked path (B not a multiple of the tile)
    # with bf16 features streamed in their native dtype.
    batch2 = 20
    features2 = jax.random.normal(
        k_feat2, (batch2, latent_dim), dtype=jnp.float32).astype(jnp.bfloat16)
    center2 = center.astype(jnp.bfloat16)
    for reduction in ("mean", "sum", "simple"):
        got = jax.block_until_ready(
            deep_svdd_loss(features2, center2, radius, nu=0.1,
                           reduction=reduction, block_rows=8))
        want = _reference(features2, center2, radius, nu=0.1, reduction=reduction)
        if not jnp.allclose(got, want, rtol=1e-5, atol=1e-5):
            ok = False
            print(f"MISMATCH tiled/bf16 [{reduction}]: got={got} want={want}")

    if ok:
        print("KERNEL_OK")
</pallas_src>

<mosaic_0001>
module attributes {stable_mosaic.version = 11 : i64} {
  func.func @_svdd_kernel(%arg0: i32, %arg1: memref<1xf32, #tpu.memory_space<smem>>, %arg2: memref<2x32xf32, #tpu.memory_space<vmem>>, %arg3: memref<1x32xf32, #tpu.memory_space<vmem>>, %arg4: memref<1xf32, #tpu.memory_space<smem>>, %arg5: memref<1xf32, #tpu.memory_space<smem>>) attributes {dimension_semantics = [#tpu.dimension_semantics<arbitrary>], iteration_bounds = array<i64: 1>, scalar_prefetch = 0 : i64, scratch_operands = 1 : i64, tpu.core_type = #tpu.core_type<tc>, window_params = [{transform_indices = @transform_0, window_bounds = array<i64: 1>}, {transform_indices = @transform_1, window_bounds = array<i64: 2, 32>}, {pipeline_mode = #tpu.pipeline_mode<synchronous>, transform_indices = @transform_2, window_bounds = array<i64: 1, 32>}, {transform_indices = @transform_3, window_bounds = array<i64: 1>}]} {
    %c0_i32 = arith.constant 0 : i32
    %0 = arith.cmpi eq, %arg0, %c0_i32 : i32
    %1 = arith.extui %0 : i1 to i32
    %c0_i32_0 = arith.constant 0 : i32
    %2 = arith.cmpi ne, %1, %c0_i32_0 : i32
    scf.if %2 {
      %cst_13 = arith.constant 0.000000e+00 : f32
      %c0_14 = arith.constant 0 : index
      %34 = memref.load %arg5[%c0_14] : memref<1xf32, #tpu.memory_space<smem>>
      memref.store %cst_13, %arg5[%c0_14] : memref<1xf32, #tpu.memory_space<smem>>
    } else {
    }
    %c0 = arith.constant 0 : index
    %c0_1 = arith.constant 0 : index
    %3 = vector.load %arg2[%c0, %c0_1] : memref<2x32xf32, #tpu.memory_space<vmem>>, vector<2x32xf32>
    %c0_2 = arith.constant 0 : index
    %c0_3 = arith.constant 0 : index
    %4 = vector.load %arg3[%c0_2, %c0_3] : memref<1x32xf32, #tpu.memory_space<vmem>>, vector<1x32xf32>
    %5 = vector.broadcast %4 : vector<1x32xf32> to vector<2x32xf32>
    %6 = arith.subf %3, %5 : vector<2x32xf32>
    %7 = arith.mulf %6, %6 : vector<2x32xf32>
    %cst = arith.constant dense<0.000000e+00> : vector<2xf32>
    %8 = vector.multi_reduction <add>, %7, %cst [1] : vector<2x32xf32> to vector<2xf32>
    %9 = vector.shape_cast %8 : vector<2xf32> to vector<2x1xf32>
    %10 = tpu.iota {dimensions = array<i32: 0>} : vector<2x1xi32>
    %c2_i32 = arith.constant 2 : i32
    %11 = arith.muli %arg0, %c2_i32 : i32
    %12 = vector.broadcast %11 : i32 to vector<2x1xi32>
    %13 = arith.addi %10, %12 : vector<2x1xi32>
    %c2_i32_4 = arith.constant 2 : i32
    %14 = vector.broadcast %c2_i32_4 : i32 to vector<2x1xi32>
    %15 = arith.cmpi slt, %13, %14 : vector<2x1xi32>
    %c0_5 = arith.constant 0 : index
    %16 = memref.load %arg1[%c0_5] : memref<1xf32, #tpu.memory_space<smem>>
    %17 = arith.mulf %16, %16 : f32
    %18 = vector.broadcast %17 : f32 to vector<2x1xf32>
    %19 = arith.subf %9, %18 : vector<2x1xf32>
    %cst_6 = arith.constant 0.000000e+00 : f32
    %20 = vector.broadcast %cst_6 : f32 to vector<2x1xf32>
    %21 = arith.maximumf %19, %20 : vector<2x1xf32>
    %cst_7 = arith.constant 0.000000e+00 : f32
    %22 = vector.broadcast %cst_7 : f32 to vector<2x1xf32>
    %23 = arith.select %15, %21, %22 : vector<2x1xi1>, vector<2x1xf32>
    %c0_8 = arith.constant 0 : index
    %24 = memref.load %arg5[%c0_8] : memref<1xf32, #tpu.memory_space<smem>>
    %25 = vector.shape_cast %23 : vector<2x1xf32> to vector<1x2x1xf32>
    %cst_9 = arith.constant dense<0.000000e+00> : vector<1xf32>
    %26 = vector.multi_reduction <add>, %25, %cst_9 [1, 2] : vector<1x2x1xf32> to vector<1xf32>
    %27 = vector.shape_cast %26 : vector<1xf32> to vector<1x1x1xf32>
    %28 = vector.extract %27[0, 0, 0] : f32 from vector<1x1x1xf32>
    %29 = arith.addf %24, %28 : f32
    %c0_10 = arith.constant 0 : index
    %30 = memref.load %arg5[%c0_10] : memref<1xf32, #tpu.memory_space<smem>>
    memref.store %29, %arg5[%c0_10] : memref<1xf32, #tpu.memory_space<smem>>
    %c0_i32_11 = arith.constant 0 : i32
    %31 = arith.cmpi eq, %arg0, %c0_i32_11 : i32
    %32 = arith.extui %31 : i1 to i32
    %c0_i32_12 = arith.constant 0 : i32
    %33 = arith.cmpi ne, %32, %c0_i32_12 : i32
    scf.if %33 {
      %c0_13 = arith.constant 0 : index
      %34 = memref.load %arg5[%c0_13] : memref<1xf32, #tpu.memory_space<smem>>
      %c0_14 = arith.constant 0 : index
      %35 = memref.load %arg1[%c0_14] : memref<1xf32, #tpu.memory_space<smem>>
      %36 = arith.mulf %35, %35 : f32
      %cst_15 = arith.constant 5.000000e+00 : f32
      %37 = arith.mulf %cst_15, %34 : f32
      %38 = arith.addf %36, %37 : f32
      %c0_16 = arith.constant 0 : index
      %39 = memref.load %arg4[%c0_16] : memref<1xf32, #tpu.memory_space<smem>>
      memref.store %38, %arg4[%c0_16] : memref<1xf32, #tpu.memory_space<smem>>
    } else {
    }
    return
  }
  func.func @transform_0(%arg0: i32) -> i32 {
    %c0_i32 = arith.constant 0 : i32
    %c0_i32_0 = arith.constant 0 : i32
    return %c0_i32 : i32
  }
  func.func @transform_1(%arg0: i32) -> (i32, i32) {
    %c0_i32 = arith.constant 0 : i32
    %c0_i32_0 = arith.constant 0 : i32
    return %arg0, %c0_i32 : i32, i32
  }
  func.func @transform_2(%arg0: i32) -> (i32, i32) {
    %c0_i32 = arith.constant 0 : i32
    %c0_i32_0 = arith.constant 0 : i32
    %c0_i32_1 = arith.constant 0 : i32
    return %c0_i32, %c0_i32_0 : i32, i32
  }
  func.func @transform_3(%arg0: i32) -> i32 {
    %c0_i32 = arith.constant 0 : i32
    %c0_i32_0 = arith.constant 0 : i32
    return %c0_i32 : i32
  }
}

</mosaic_0001>

<llo_original>
// kernel: tpu_custom_call.1
$region0: #{tpu_custom_call.1}
  #allocation0 [shape = 'u32[]', space=smem, size = 0x4, offset = 0x4, fixed_abs, tag = 'smem constant byte address 0x4 - core index']
  #allocation1 [shape = 'u32[72,128]{1,0:T(1,128)}', space=vmem, size = 0x9000, scoped, tag = 'internal scratch']
  #allocation2 [shape = 'f32[1]{0:T(128)}', space=smem, size = 0x200, scoped, tag = 'scratch operand']
  #allocation3 [shape = 'f32[1]{0:T(128)S(6)}', space=smem, size = 0x200, scoped, tag = 'scoped memory for tpu_custom_call.1']
  %s0 = inlined_call_operand.<no memory space> [shape: f32[1], index: 0, kind: input, shape index: {}]
  %s1 = inlined_call_operand.vmem [shape: f32[2,32], index: 1, kind: input, shape index: {}]
  %s2 = inlined_call_operand.hbm [shape: f32[1,32], index: 2, kind: input, shape index: {}]
  %s3 = inlined_call_operand.hbm [shape: f32[1], index: 3, kind: output, shape index: {}]
  %s4 = sld [smem:[#allocation0]]
  $region34: #{tpu_custom_call.1} parent=0
    _
  %s6 = ssub.s32 1, %s4
  %s7 = scalar_select 0, %s6, %s4
  %8 = sst [smem:[#allocation3]] %s0
  $region1: #{tpu_custom_call.1} parent=0
    #allocation4 [shape = 'u8[512]{0}', space=vmem, size = 0x400, scoped, tag = 'input window, operand 2, single buffered']
    #allocation5 [shape = 's32[1]{0}', space=sflag, size = 0x4, scoped, tag = 'scoped memory for tpu_custom_call.1']
    #allocation6 [shape = 's32[1]{0}', space=sflag, size = 0x4, scoped, tag = 'scoped memory for tpu_custom_call.1']
    #allocation7 [shape = 'u8[512]{0}', space=smem, size = 0x200, scoped, tag = 'output window, operand 0, single buffered']
    %9 = vsyncpa [#allocation5], 0
    %10 = vsyncpa [#allocation6], 0
    // Predicated region
    $region2: #{tpu_custom_call.1} parent=1 // pred_check
      _
    $region3: #{tpu_custom_call.1} parent=1 // pred_check_branch
      %12 = sbr.rel (0) target = $region5
    $region4: #{tpu_custom_call.1} parent=1 // pred_region
      _
    $region5: #{tpu_custom_call.1} parent=1 // pred_fallthru
      _
    // Predicated region
    $region6: #{tpu_custom_call.1} parent=1 // pred_check
      _
    $region7: #{tpu_custom_call.1} parent=1 // pred_check_branch
      %14 = sbr.rel (0) target = $region9
    $region8: #{tpu_custom_call.1} parent=1 // pred_region
      _
    $region9: #{tpu_custom_call.1} parent=1 // pred_fallthru
      _
    // Predicated region
    $region10: #{tpu_custom_call.1} parent=1 // pred_check
      _
    $region11: #{tpu_custom_call.1} parent=1 // pred_check_branch
      %16 = sbr.rel (0) target = $region13
    $region12: #{tpu_custom_call.1} parent=1 // pred_region
      %18 = vsyncadd [#allocation5], 0
      %s20 = sshll.u32 %s2, 4
      %s21 = int_to_ptr.hbm [resolvable:$true] %s20
      %s22 = sshll.u32 [#allocation4], 4
      %s23 = int_to_ptr.vmem [resolvable:$true] %s22
      %25 = dma.hbm_to_vmem [thread:$0]  %s21, 16, %s23, [#allocation5]
    $region13: #{tpu_custom_call.1} parent=1 // pred_fallthru
      _
    // Predicated region
    $region14: #{tpu_custom_call.1} parent=1 // pred_check
      _
    $region15: #{tpu_custom_call.1} parent=1 // pred_check_branch
      %27 = sbr.rel (0) target = $region17
    $region16: #{tpu_custom_call.1} parent=1 // pred_region
      %29 = dma.done [#allocation5], 16
    $region17: #{tpu_custom_call.1} parent=1 // pred_fallthru
      _
    %p30 = scmp.eq.s32.totalorder 0, 0
    // Predicated region
    $region18: #{tpu_custom_call.1} parent=1 // pred_check
      %p31 = pneg %p30
    $region19: #{tpu_custom_call.1} parent=1 // pred_check_branch
      %33 = sbr.rel (%p31) target = $region21
    $region20: #{tpu_custom_call.1} parent=1 // pred_region
      %s34 = scalar_lea.smem [#allocation2], 0
      %35 = sst [smem:[%s34]] 0.0
    $region21: #{tpu_custom_call.1} parent=1 // pred_fallthru
      _
    %v36 = vld [vmem:[%s1] sm:$0x3]
    %v37 = vld [vmem:[#allocation4] sm:$0x1]
    %v39 = vperm.slane %v37, 0
    %v41 = vsub.f32 %v36, %v39
    %v42 = vmul.f32 %v41, %v41
    %vm43 = vcmask 254976
    %v44 = vsel %vm43, %v42, 0.0
    %45 = vadd.xlane.f32.xlu0 %v44
    %v46 = vpop.xlane.xlu0 %45
    %v47 = vlaneseq
    %v48 = vshrl.u32 %v47, 7
    %s49 = smul.u32 0, 2
    %v50 = vstv %s49
    %v51 = vadd.s32 %v48, %v50
    %vm52 = vcmp.lt.s32.totalorder %v51, 2
    %s53 = sld [smem:[#allocation3]]
    %s54 = smul.f32 %s53, %s53
    %v55 = vstv %s54
    %v56 = vsub.f32 %v46, %v55
    %v57 = vmax.f32 %v56, 0.0
    %v58 = vsel %vm52, %v57, 0.0
    %s59 = sld [smem:[#allocation2]]
    %vm60 = vcmask 1024
    %v61 = vsel %vm60, %v58, 0.0
    %62 = vadd.xlane.f32.xlu0 %v61
    %v63 = vpop.xlane.xlu0 %62
    %v64 = vrot.slane %v63, 4
    %v65 = vadd.f32 %v63, %v64
    %v66 = vrot.slane %v65, 2
    %v67 = vadd.f32 %v65, %v66
    %v68 = vrot.slane %v67, 1
    %v69 = vadd.f32 %v67, %v68
    %s70 = vtos %v69
    %s71 = sadd.f32 %s59, %s70
    %s72 = scalar_lea.smem [#allocation2], 0
    %73 = sst [smem:[%s72]] %s71
    // Predicated region
    $region22: #{tpu_custom_call.1} parent=1 // pred_check
      %p74 = pneg %p30
    $region23: #{tpu_custom_call.1} parent=1 // pred_check_branch
      %76 = sbr.rel (%p74) target = $region25
    $region24: #{tpu_custom_call.1} parent=1 // pred_region
      %s77 = sld [smem:[#allocation2]]
      %s78 = sld [smem:[#allocation3]]
      %s79 = smul.f32 %s78, %s78
      %s80 = smul.f32 %s77, 5.0
      %s81 = sadd.f32 %s79, %s80
      %s82 = scalar_lea.smem [#allocation7], 0
      %83 = sst [smem:[%s82]] %s81
    $region25: #{tpu_custom_call.1} parent=1 // pred_fallthru
      _
    // Predicated region
    $region26: #{tpu_custom_call.1} parent=1 // pred_check
      _
    $region27: #{tpu_custom_call.1} parent=1 // pred_check_branch
      %85 = sbr.rel (0) target = $region29
    $region28: #{tpu_custom_call.1} parent=1 // pred_region
      %87 = vsyncadd [#allocation6], 0
      %s89 = sshll.u32 %s3, 4
      %s90 = int_to_ptr.hbm [resolvable:$true] %s89
      %92 = dma.smem_to_hbm [#allocation7], 16, %s90, [#allocation6]
    $region29: #{tpu_custom_call.1} parent=1 // pred_fallthru
      _
    // Predicated region
    $region30: #{tpu_custom_call.1} parent=1 // pred_check
      _
    $region31: #{tpu_custom_call.1} parent=1 // pred_check_branch
      %94 = sbr.rel (0) target = $region33
    $region32: #{tpu_custom_call.1} parent=1 // pred_region
      %96 = dma.done [#allocation6], 16
    $region33: #{tpu_custom_call.1} parent=1 // pred_fallthru
      _
    %97 = sfence
    %98 = vsyncpa [#allocation5], 1
    %99 = vsyncpa [#allocation6], 1

</llo_original>
